<compile_context>
chip_gen: v7x
topology: tpu7x:2x2x1
jax: 0.10.0
libtpu: 0.0.40
codegen_flags: <defaults>
</compile_context>

<pallas_src>
import functools

import jax
import jax.numpy as jnp
from jax.experimental import pallas as pl
from jax.experimental.pallas import tpu as pltpu

LN_EPS = 1e-5  # config.layer_norm_eps (RoBERTa default)
_INV_SQRT2 = 0.7071067811865476


def _round_up(x, m):
    return (x + m - 1) // m * m


# ----------------------------- Pallas kernels ------------------------------ #

def _lm_head_kernel(feat_ref, wd_ref, bd_ref, g_ref, beta_ref, wdec_ref,
                    bdec_ref, out_ref, hn_ref):
    """RobertaLMHead: dense -> gelu -> layernorm (cached) -> decoder tile."""

    # dense + gelu + layernorm only once per row tile (vocab axis is inner,
    # "arbitrary", so j == 0 always runs first for each row tile / core).
    @pl.when(pl.program_id(1) == 0)
    def _():
        # [tm, H] @ [H, H], f32 accumulation on the MXU.
        h = jnp.dot(feat_ref[...], wd_ref[...],
                    preferred_element_type=jnp.float32)
        h = h + bd_ref[...].astype(jnp.float32)

        # exact GELU: 0.5 * x * (1 + erf(x / sqrt(2)))
        h = 0.5 * h * (1.0 + jax.lax.erf(h * jnp.float32(_INV_SQRT2)))

        # LayerNorm over the hidden (last) axis, in f32.
        mean = jnp.mean(h, axis=-1, keepdims=True)
        var = jnp.mean((h - mean) * (h - mean), axis=-1, keepdims=True)
        hn = (h - mean) * jax.lax.rsqrt(var + jnp.float32(LN_EPS))
        hn = hn * g_ref[...].astype(jnp.float32) + beta_ref[...].astype(jnp.float32)
        hn_ref[...] = hn.astype(hn_ref.dtype)

    # decoder vocab tile: [tm, H] @ [H, tn] + [1, tn]
    out = jnp.dot(hn_ref[...], wdec_ref[...],
                  preferred_element_type=jnp.float32)
    out = out + bdec_ref[...].astype(jnp.float32)
    out_ref[...] = out.astype(out_ref.dtype)


def _seq_rel_kernel(pooled_ref, w_ref, b_ref, out_ref):
    """seq_relationship Linear(hidden_size -> 2), lane-padded to 128."""
    out = jnp.dot(pooled_ref[...], w_ref[...],
                  preferred_element_type=jnp.float32)
    out_ref[...] = (out + b_ref[...].astype(jnp.float32)).astype(out_ref.dtype)


# ------------------------------- Wrapper ------------------------------------ #

@functools.partial(jax.jit, static_argnames=("tm", "tn", "out_dtype"))
def bert_pretraining_heads(sequence_output, pooled_output, params, *,
                           tm=512, tn=1024, out_dtype=None):
    B, S, H = sequence_output.shape
    V = params["w_decoder"].shape[1]
    N = B * S
    feat_dtype = sequence_output.dtype
    out_dtype = feat_dtype if out_dtype is None else jnp.dtype(out_dtype)

    # Operands in the activation dtype (bf16-ready, MXU-native); accumulation
    # stays f32 via preferred_element_type. astype is a no-op when params are
    # already stored in this dtype (recommended: pre-cast params once outside
    # the training step so this never copies the HxV decoder weight).
    w_dense = params["w_dense"].astype(feat_dtype)
    w_dec = params["w_decoder"].astype(feat_dtype)
    b_dense = params["b_dense"].reshape(1, H)          # small, kept f32
    gamma = params["ln_gamma"].reshape(1, H)
    beta = params["ln_beta"].reshape(1, H)
    b_dec = params["decoder_bias"].reshape(1, V)

    # Row tile: the decoder weight is re-streamed once per row tile, so its
    # arithmetic intensity is 2*tm/wsize flops per weight byte — keep tm big.
    # Also keep >= 2 row tiles so the "parallel" axis shards across v7x's 2 TCs.
    if N <= tm:
        tm_eff = _round_up(pl.cdiv(N, 2), 8) if N >= 16 else N
    elif N >= 8 * tm:
        tm_eff = 2 * tm
    else:
        tm_eff = tm

    # Vocab tile: lane-dense; reuse comes from tm, not tn, so modest tn keeps
    # VMEM free for a bigger tm. The trailing partial tile (V % tn != 0) is a
    # masked store handled by Pallas — no host-side pad of W_dec / b_dec and no
    # post-kernel [:N, :V] slice (both were full-array copies).
    tn_eff = V if V <= tn else tn

    grid = (pl.cdiv(N, tm_eff), pl.cdiv(V, tn_eff))

    feat2d = sequence_output.reshape(N, H)

    isize = jnp.dtype(feat_dtype).itemsize
    osize = jnp.dtype(out_dtype).itemsize

    # Size scoped VMEM from the actual tile budget (double-buffered streams),
    # clamped to 48 MiB so it leaves headroom within v7x's 64 MiB VMEM.
    vmem_est = (2 * tm_eff * H * isize            # feature tiles
                + 2 * H * H * isize               # dense weight
                + 2 * H * tn_eff * isize          # decoder weight tiles
                + 2 * tm_eff * tn_eff * osize     # output tiles
                + tm_eff * H * isize              # hn scratch
                + 8 * (3 * H + tn_eff) * 4)       # biases / gamma / beta
    vmem_limit = int(min(max(int(vmem_est * 1.25) + (4 << 20), 16 << 20),
                         48 << 20))

    cost = pl.CostEstimate(
        flops=2 * N * H * (H + V),
        transcendentals=N * H,
        bytes_accessed=(N * H * isize + H * H * isize
                        + grid[0] * H * V * isize     # W_dec streamed per row tile
                        + N * V * osize))

    pred2d = pl.pallas_call(
        _lm_head_kernel,
        out_shape=jax.ShapeDtypeStruct((N, V), out_dtype),
        grid_spec=pltpu.PrefetchScalarGridSpec(
            num_scalar_prefetch=0,
            grid=grid,
            in_specs=[
                pl.BlockSpec((tm_eff, H), lambda i, j: (i, 0)),   # features
                pl.BlockSpec((H, H), lambda i, j: (0, 0)),        # dense W
                pl.BlockSpec((1, H), lambda i, j: (0, 0)),        # dense b
                pl.BlockSpec((1, H), lambda i, j: (0, 0)),        # LN gamma
                pl.BlockSpec((1, H), lambda i, j: (0, 0)),        # LN beta
                pl.BlockSpec((H, tn_eff), lambda i, j: (0, j)),   # decoder W tile
                pl.BlockSpec((1, tn_eff), lambda i, j: (0, j)),   # decoder bias tile
            ],
            out_specs=pl.BlockSpec((tm_eff, tn_eff), lambda i, j: (i, j)),
            scratch_shapes=[pltpu.VMEM((tm_eff, H), feat_dtype)],  # hn cache
        ),
        compiler_params=pltpu.CompilerParams(
            # vocab axis MUST stay "arbitrary": the hn cache relies on j == 0
            # running first for every row tile.
            dimension_semantics=("parallel", "arbitrary"),
            vmem_limit_bytes=vmem_limit),
        cost_estimate=cost,
    )(feat2d, w_dense, b_dense, gamma, beta, w_dec, b_dec)
    prediction_scores = pred2d.reshape(B, S, V)   # free reshape, no copy

    # --- seq_relationship: tiny matmul, single block, lane dim padded to 128 ---
    sr_pad = 128
    w_sr = jnp.pad(params["w_seq_rel"].astype(pooled_output.dtype),
                   ((0, 0), (0, sr_pad - 2)))
    b_sr = jnp.pad(params["b_seq_rel"].reshape(1, 2), ((0, 0), (0, sr_pad - 2)))
    seq_rel_padded = pl.pallas_call(
        _seq_rel_kernel,
        out_shape=jax.ShapeDtypeStruct((B, sr_pad), out_dtype),
        in_specs=[pl.BlockSpec(memory_space=pltpu.MemorySpace.VMEM)] * 3,
        out_specs=pl.BlockSpec(memory_space=pltpu.MemorySpace.VMEM),
    )(pooled_output, w_sr, b_sr)
    seq_relationship_score = seq_rel_padded[:, :2]

    return prediction_scores, seq_relationship_score


# ----------------------------- Test scaffolding ----------------------------- #

def init_params(key, hidden_size, vocab_size):
    """Deterministic synthetic parameters. Weights stored as [in, out]."""
    ks = jax.random.split(key, 6)
    s = 0.02
    return {
        "w_dense": (s * jax.random.normal(ks[0], (hidden_size, hidden_size))
                    ).astype(jnp.float32),
        "b_dense": (s * jax.random.normal(ks[1], (hidden_size,))
                    ).astype(jnp.float32),
        "ln_gamma": jnp.ones((hidden_size,), jnp.float32),
        "ln_beta": jnp.zeros((hidden_size,), jnp.float32),
        "w_decoder": (s * jax.random.normal(ks[2], (hidden_size, vocab_size))
                      ).astype(jnp.float32),
        # self.bias = nn.Parameter(torch.zeros(vocab_size)); decoder.bias = self.bias
        "decoder_bias": jnp.zeros((vocab_size,), jnp.float32),
        "w_seq_rel": (s * jax.random.normal(ks[3], (hidden_size, 2))
                      ).astype(jnp.float32),
        "b_seq_rel": (s * jax.random.normal(ks[4], (2,))).astype(jnp.float32),
    }


def _reference(sequence_output, pooled_output, params):
    """Plain-JAX reference for a sanity check."""
    x = sequence_output @ params["w_dense"] + params["b_dense"]
    x = 0.5 * x * (1.0 + jax.lax.erf(x / jnp.sqrt(2.0)))
    mean = jnp.mean(x, axis=-1, keepdims=True)
    var = jnp.mean((x - mean) ** 2, axis=-1, keepdims=True)
    x = (x - mean) * jax.lax.rsqrt(var + LN_EPS)
    x = x * params["ln_gamma"] + params["ln_beta"]
    pred = x @ params["w_decoder"] + params["decoder_bias"]
    seq_rel = pooled_output @ params["w_seq_rel"] + params["b_seq_rel"]
    return pred, seq_rel


if __name__ == "__main__":
    B, S, H, V = 2, 8, 32, 64

    key = jax.random.PRNGKey(0)
    k_seq, k_pool, k_params = jax.random.split(key, 3)
    sequence_output = jax.random.normal(k_seq, (B, S, H), jnp.float32)
    pooled_output = jax.random.normal(k_pool, (B, H), jnp.float32)
    params = init_params(k_params, H, V)

    pred, seq_rel = bert_pretraining_heads(sequence_output, pooled_output, params)
    pred, seq_rel = jax.block_until_ready((pred, seq_rel))

    ref_pred, ref_seq = _reference(sequence_output, pooled_output, params)
    assert pred.shape == (B, S, V) and seq_rel.shape == (B, 2)
    assert jnp.allclose(pred, ref_pred, atol=1e-4, rtol=1e-4)
    assert jnp.allclose(seq_rel, ref_seq, atol=1e-4, rtol=1e-4)

    print("KERNEL_OK")
</pallas_src>

<mosaic_0001>
module attributes {stable_mosaic.version = 11 : i64} {
  func.func @_seq_rel_kernel(%arg0: memref<2x32xf32, #tpu.memory_space<vmem>>, %arg1: memref<32x128xf32, #tpu.memory_space<vmem>>, %arg2: memref<1x128xf32, #tpu.memory_space<vmem>>, %arg3: memref<2x128xf32, #tpu.memory_space<vmem>>) attributes {dimension_semantics = [], scalar_prefetch = 0 : i64, scratch_operands = 0 : i64, tpu.core_type = #tpu.core_type<tc>} {
    %c0 = arith.constant 0 : index
    %c0_0 = arith.constant 0 : index
    %0 = vector.load %arg0[%c0, %c0_0] : memref<2x32xf32, #tpu.memory_space<vmem>>, vector<2x32xf32>
    %c0_1 = arith.constant 0 : index
    %c0_2 = arith.constant 0 : index
    %1 = vector.load %arg1[%c0_1, %c0_2] : memref<32x128xf32, #tpu.memory_space<vmem>>, vector<32x128xf32>
    %cst = arith.constant dense<0.000000e+00> : vector<2x128xf32>
    %2 = tpu.matmul %0, %1, %cst {dimension_numbers = #tpu.dot_dimension_numbers<[1], [0], [0], [1], [0, 0, 1, 1], [], []>} : vector<2x32xf32>, vector<32x128xf32>, vector<2x128xf32> -> vector<2x128xf32>
    %c0_3 = arith.constant 0 : index
    %c0_4 = arith.constant 0 : index
    %3 = vector.load %arg2[%c0_3, %c0_4] : memref<1x128xf32, #tpu.memory_space<vmem>>, vector<1x128xf32>
    %4 = vector.broadcast %3 : vector<1x128xf32> to vector<2x128xf32>
    %5 = arith.addf %2, %4 : vector<2x128xf32>
    %c0_5 = arith.constant 0 : index
    %c0_6 = arith.constant 0 : index
    %6 = vector.load %arg3[%c0_5, %c0_6] : memref<2x128xf32, #tpu.memory_space<vmem>>, vector<2x128xf32>
    tpu.vector_store %arg3[%c0_5, %c0_6], %5 {strides = array<i32>} : memref<2x128xf32, #tpu.memory_space<vmem>>, vector<2x128xf32>,
    return
  }
}

module attributes {stable_mosaic.version = 11 : i64} {
  func.func @_lm_head_kernel(%arg0: i32, %arg1: i32, %arg2: memref<8x32xf32, #tpu.memory_space<vmem>>, %arg3: memref<32x32xf32, #tpu.memory_space<vmem>>, %arg4: memref<1x32xf32, #tpu.memory_space<vmem>>, %arg5: memref<1x32xf32, #tpu.memory_space<vmem>>, %arg6: memref<1x32xf32, #tpu.memory_space<vmem>>, %arg7: memref<32x64xf32, #tpu.memory_space<vmem>>, %arg8: memref<1x64xf32, #tpu.memory_space<vmem>>, %arg9: memref<8x64xf32, #tpu.memory_space<vmem>>, %arg10: memref<8x32xf32, #tpu.memory_space<vmem>>) attributes {dimension_semantics = [#tpu.dimension_semantics<parallel>, #tpu.dimension_semantics<arbitrary>], iteration_bounds = array<i64: 2, 1>, scalar_prefetch = 0 : i64, scratch_operands = 1 : i64, tpu.core_type = #tpu.core_type<tc>, window_params = [{transform_indices = @transform_0, window_bounds = array<i64: 8, 32>}, {pipeline_mode = #tpu.pipeline_mode<synchronous>, transform_indices = @transform_1, window_bounds = array<i64: 32, 32>}, {pipeline_mode = #tpu.pipeline_mode<synchronous>, transform_indices = @transform_2, window_bounds = array<i64: 1, 32>}, {pipeline_mode = #tpu.pipeline_mode<synchronous>, transform_indices = @transform_3, window_bounds = array<i64: 1, 32>}, {pipeline_mode = #tpu.pipeline_mode<synchronous>, transform_indices = @transform_4, window_bounds = array<i64: 1, 32>}, {transform_indices = @transform_5, window_bounds = array<i64: 32, 64>}, {transform_indices = @transform_6, window_bounds = array<i64: 1, 64>}, {transform_indices = @transform_7, window_bounds = array<i64: 8, 64>}]} {
    %c0_i32 = arith.constant 0 : i32
    %0 = arith.cmpi eq, %arg1, %c0_i32 : i32
    %1 = arith.extui %0 : i1 to i32
    %c0_i32_0 = arith.constant 0 : i32
    %2 = arith.cmpi ne, %1, %c0_i32_0 : i32
    scf.if %2 {
      %c0_8 = arith.constant 0 : index
      %c0_9 = arith.constant 0 : index
      %10 = vector.load %arg2[%c0_8, %c0_9] : memref<8x32xf32, #tpu.memory_space<vmem>>, vector<8x32xf32>
      %c0_10 = arith.constant 0 : index
      %c0_11 = arith.constant 0 : index
      %11 = vector.load %arg3[%c0_10, %c0_11] : memref<32x32xf32, #tpu.memory_space<vmem>>, vector<32x32xf32>
      %cst_12 = arith.constant dense<0.000000e+00> : vector<8x32xf32>
      %12 = tpu.matmul %10, %11, %cst_12 {dimension_numbers = #tpu.dot_dimension_numbers<[1], [0], [0], [1], [0, 0, 1, 1], [], []>} : vector<8x32xf32>, vector<32x32xf32>, vector<8x32xf32> -> vector<8x32xf32>
      %c0_13 = arith.constant 0 : index
      %c0_14 = arith.constant 0 : index
      %13 = vector.load %arg4[%c0_13, %c0_14] : memref<1x32xf32, #tpu.memory_space<vmem>>, vector<1x32xf32>
      %14 = vector.broadcast %13 : vector<1x32xf32> to vector<8x32xf32>
      %15 = arith.addf %12, %14 : vector<8x32xf32>
      %cst_15 = arith.constant 5.000000e-01 : f32
      %16 = vector.broadcast %cst_15 : f32 to vector<8x32xf32>
      %17 = arith.mulf %16, %15 : vector<8x32xf32>
      %cst_16 = arith.constant 0.707106769 : f32
      %18 = vector.broadcast %cst_16 : f32 to vector<8x32xf32>
      %19 = arith.mulf %15, %18 : vector<8x32xf32>
      %20 = math.erf %19 : vector<8x32xf32>
      %cst_17 = arith.constant 1.000000e+00 : f32
      %21 = vector.broadcast %cst_17 : f32 to vector<8x32xf32>
      %22 = arith.addf %21, %20 : vector<8x32xf32>
      %23 = arith.mulf %17, %22 : vector<8x32xf32>
      %cst_18 = arith.constant dense<0.000000e+00> : vector<8xf32>
      %24 = vector.multi_reduction <add>, %23, %cst_18 [1] : vector<8x32xf32> to vector<8xf32>
      %25 = vector.shape_cast %24 : vector<8xf32> to vector<8x1xf32>
      %cst_19 = arith.constant 3.200000e+01 : f32
      %26 = vector.broadcast %cst_19 : f32 to vector<8x1xf32>
      %27 = arith.divf %25, %26 : vector<8x1xf32>
      %28 = vector.broadcast %27 : vector<8x1xf32> to vector<8x32xf32>
      %29 = arith.subf %23, %28 : vector<8x32xf32>
      %30 = vector.broadcast %27 : vector<8x1xf32> to vector<8x32xf32>
      %31 = arith.subf %23, %30 : vector<8x32xf32>
      %32 = arith.mulf %29, %31 : vector<8x32xf32>
      %cst_20 = arith.constant dense<0.000000e+00> : vector<8xf32>
      %33 = vector.multi_reduction <add>, %32, %cst_20 [1] : vector<8x32xf32> to vector<8xf32>
      %34 = vector.shape_cast %33 : vector<8xf32> to vector<8x1xf32>
      %cst_21 = arith.constant 3.200000e+01 : f32
      %35 = vector.broadcast %cst_21 : f32 to vector<8x1xf32>
      %36 = arith.divf %34, %35 : vector<8x1xf32>
      %37 = vector.broadcast %27 : vector<8x1xf32> to vector<8x32xf32>
      %38 = arith.subf %23, %37 : vector<8x32xf32>
      %cst_22 = arith.constant 9.99999974E-6 : f32
      %39 = vector.broadcast %cst_22 : f32 to vector<8x1xf32>
      %40 = arith.addf %36, %39 : vector<8x1xf32>
      %41 = math.rsqrt %40 : vector<8x1xf32>
      %42 = vector.broadcast %41 : vector<8x1xf32> to vector<8x32xf32>
      %43 = arith.mulf %38, %42 : vector<8x32xf32>
      %c0_23 = arith.constant 0 : index
      %c0_24 = arith.constant 0 : index
      %44 = vector.load %arg5[%c0_23, %c0_24] : memref<1x32xf32, #tpu.memory_space<vmem>>, vector<1x32xf32>
      %45 = vector.broadcast %44 : vector<1x32xf32> to vector<8x32xf32>
      %46 = arith.mulf %43, %45 : vector<8x32xf32>
      %c0_25 = arith.constant 0 : index
      %c0_26 = arith.constant 0 : index
      %47 = vector.load %arg6[%c0_25, %c0_26] : memref<1x32xf32, #tpu.memory_space<vmem>>, vector<1x32xf32>
      %48 = vector.broadcast %47 : vector<1x32xf32> to vector<8x32xf32>
      %49 = arith.addf %46, %48 : vector<8x32xf32>
      %c0_27 = arith.constant 0 : index
      %c0_28 = arith.constant 0 : index
      %50 = vector.load %arg10[%c0_27, %c0_28] : memref<8x32xf32, #tpu.memory_space<vmem>>, vector<8x32xf32>
      tpu.vector_store %arg10[%c0_27, %c0_28], %49 {strides = array<i32>} : memref<8x32xf32, #tpu.memory_space<vmem>>, vector<8x32xf32>,
    } else {
    }
    %c0 = arith.constant 0 : index
    %c0_1 = arith.constant 0 : index
    %3 = vector.load %arg10[%c0, %c0_1] : memref<8x32xf32, #tpu.memory_space<vmem>>, vector<8x32xf32>
    %c0_2 = arith.constant 0 : index
    %c0_3 = arith.constant 0 : index
    %4 = vector.load %arg7[%c0_2, %c0_3] : memref<32x64xf32, #tpu.memory_space<vmem>>, vector<32x64xf32>
    %cst = arith.constant dense<0.000000e+00> : vector<8x64xf32>
    %5 = tpu.matmul %3, %4, %cst {dimension_numbers = #tpu.dot_dimension_numbers<[1], [0], [0], [1], [0, 0, 1, 1], [], []>} : vector<8x32xf32>, vector<32x64xf32>, vector<8x64xf32> -> vector<8x64xf32>
    %c0_4 = arith.constant 0 : index
    %c0_5 = arith.constant 0 : index
    %6 = vector.load %arg8[%c0_4, %c0_5] : memref<1x64xf32, #tpu.memory_space<vmem>>, vector<1x64xf32>
    %7 = vector.broadcast %6 : vector<1x64xf32> to vector<8x64xf32>
    %8 = arith.addf %5, %7 : vector<8x64xf32>
    %c0_6 = arith.constant 0 : index
    %c0_7 = arith.constant 0 : index
    %9 = vector.load %arg9[%c0_6, %c0_7] : memref<8x64xf32, #tpu.memory_space<vmem>>, vector<8x64xf32>
    tpu.vector_store %arg9[%c0_6, %c0_7], %8 {strides = array<i32>} : memref<8x64xf32, #tpu.memory_space<vmem>>, vector<8x64xf32>,
    return
  }
  func.func @transform_0(%arg0: i32, %arg1: i32) -> (i32, i32) {
    %c0_i32 = arith.constant 0 : i32
    %c0_i32_0 = arith.constant 0 : i32
    return %arg0, %c0_i32 : i32, i32
  }
  func.func @transform_1(%arg0: i32, %arg1: i32) -> (i32, i32) {
    %c0_i32 = arith.constant 0 : i32
    %c0_i32_0 = arith.constant 0 : i32
    %c0_i32_1 = arith.constant 0 : i32
    return %c0_i32, %c0_i32_0 : i32, i32
  }
  func.func @transform_2(%arg0: i32, %arg1: i32) -> (i32, i32) {
    %c0_i32 = arith.constant 0 : i32
    %c0_i32_0 = arith.constant 0 : i32
    %c0_i32_1 = arith.constant 0 : i32
    return %c0_i32, %c0_i32_0 : i32, i32
  }
  func.func @transform_3(%arg0: i32, %arg1: i32) -> (i32, i32) {
    %c0_i32 = arith.constant 0 : i32
    %c0_i32_0 = arith.constant 0 : i32
    %c0_i32_1 = arith.constant 0 : i32
    return %c0_i32, %c0_i32_0 : i32, i32
  }
  func.func @transform_4(%arg0: i32, %arg1: i32) -> (i32, i32) {
    %c0_i32 = arith.constant 0 : i32
    %c0_i32_0 = arith.constant 0 : i32
    %c0_i32_1 = arith.constant 0 : i32
    return %c0_i32, %c0_i32_0 : i32, i32
  }
  func.func @transform_5(%arg0: i32, %arg1: i32) -> (i32, i32) {
    %c0_i32 = arith.constant 0 : i32
    %c0_i32_0 = arith.constant 0 : i32
    return %c0_i32, %arg1 : i32, i32
  }
  func.func @transform_6(%arg0: i32, %arg1: i32) -> (i32, i32) {
    %c0_i32 = arith.constant 0 : i32
    %c0_i32_0 = arith.constant 0 : i32
    return %c0_i32, %arg1 : i32, i32
  }
  func.func @transform_7(%arg0: i32, %arg1: i32) -> (i32, i32) {
    %c0_i32 = arith.constant 0 : i32
    return %arg0, %arg1 : i32, i32
  }
}

</mosaic_0001>

<llo_original>
// kernel: bert_pretraining_heads.3
$region0: #{bert_pretraining_heads.3}
  #allocation0 [shape = 'u32[]', space=smem, size = 0x4, offset = 0x4, fixed_abs, tag = 'smem constant byte address 0x4 - core index']
  #allocation1 [shape = 'u32[144,128]{1,0:T(1,128)}', space=vmem, size = 0x12000, scoped, tag = 'internal scratch']
  %s0 = inlined_call_operand.vmem [shape: f32[2,32], index: 0, kind: input, shape index: {}]
  %s1 = inlined_call_operand.vmem [shape: f32[32,128], index: 1, kind: input, shape index: {}]
  %s2 = inlined_call_operand.vmem [shape: f32[1,128], index: 2, kind: input, shape index: {}]
  %s3 = inlined_call_operand.hbm [shape: f32[2,128], index: 3, kind: output, shape index: {}]
  %s4 = sld [smem:[#allocation0]]
  $region22: #{bert_pretraining_heads.3} parent=0
    _
  %s6 = ssub.s32 1, %s4
  %s7 = scalar_select 0, %s6, %s4
  $region1: #{bert_pretraining_heads.3} parent=0
    #allocation2 [shape = 'u8[1024]{0}', space=vmem, size = 0x400, scoped, tag = 'output window, operand 0, single buffered']
    #allocation3 [shape = 's32[1]{0}', space=sflag, size = 0x4, scoped, tag = 'scoped memory for bert_pretraining_heads.3']
    %8 = vsyncpa [#allocation3], 0
    // Predicated region
    $region2: #{bert_pretraining_heads.3} parent=1 // pred_check
      _
    $region3: #{bert_pretraining_heads.3} parent=1 // pred_check_branch
      %10 = sbr.rel (0) target = $region5
    $region4: #{bert_pretraining_heads.3} parent=1 // pred_region
      _
    $region5: #{bert_pretraining_heads.3} parent=1 // pred_fallthru
      _
    // Predicated region
    $region6: #{bert_pretraining_heads.3} parent=1 // pred_check
      _
    $region7: #{bert_pretraining_heads.3} parent=1 // pred_check_branch
      %12 = sbr.rel (0) target = $region9
    $region8: #{bert_pretraining_heads.3} parent=1 // pred_region
      _
    $region9: #{bert_pretraining_heads.3} parent=1 // pred_fallthru
      _
    // Predicated region
    $region10: #{bert_pretraining_heads.3} parent=1 // pred_check
      _
    $region11: #{bert_pretraining_heads.3} parent=1 // pred_check_branch
      %14 = sbr.rel (0) target = $region13
    $region12: #{bert_pretraining_heads.3} parent=1 // pred_region
      _
    $region13: #{bert_pretraining_heads.3} parent=1 // pred_fallthru
      _
    %v15 = vld [vmem:[%s0] sm:$0x3]
    %v16 = vld [vmem:[%s1] sm:$0xff]
    %v17 = vld [vmem:[%s1 + $0x8] sm:$0xff]
    %v18 = vld [vmem:[%s1 + $0x10] sm:$0xff]
    %v19 = vld [vmem:[%s1 + $0x18] sm:$0xff]
    %v20 = vld [vmem:[%s2] sm:$0x1]
    %v22 = vlaneseq
    %v23 = vshrl.u32 %v22, 7
    %v24 = vsub.s32 0, %v23
    %v25 = vrot.slane %v20, %v24
    %vm27 = vcmask 261120
    %v29 = vsel %vm27, %v15, 0
    %31 = vmatprep.subr.mxu0 0.0
    %32 = vmatpush1.msra.mxu0 %v16
    %33 = vmatprep.subr.mxu0 0.0
    %34 = vmatpush1.msra.mxu0 %v17
    %35 = vmatprep.subr.mxu0 0.0
    %36 = vmatpush1.msra.mxu0 %v18
    %37 = vmatprep.subr.mxu0 0.0
    %38 = vmatpush1.msra.mxu0 %v19
    %39 = vmatprep.subr.mxu0 0.0
    %40 = vmatpush1.msra.mxu0 0.0
    %41 = vmatprep.subr.mxu0 0.0
    %42 = vmatpush1.msra.mxu0 0.0
    %43 = vmatprep.subr.mxu0 0.0
    %44 = vmatpush1.msra.mxu0 0.0
    %45 = vmatprep.subr.mxu0 0.0
    %46 = vmatpush1.msra.mxu0 0.0
    %47 = vmatprep.subr.mxu0 0.0
    %48 = vmatpush1.msra.mxu0 0.0
    %49 = vmatprep.subr.mxu0 0.0
    %50 = vmatpush1.msra.mxu0 0.0
    %51 = vmatprep.subr.mxu0 0.0
    %52 = vmatpush1.msra.mxu0 0.0
    %53 = vmatprep.subr.mxu0 0.0
    %54 = vmatpush1.msra.mxu0 0.0
    %55 = vmatprep.subr.mxu0 0.0
    %56 = vmatpush1.msra.mxu0 0.0
    %57 = vmatprep.subr.mxu0 0.0
    %58 = vmatpush1.msra.mxu0 0.0
    %59 = vmatprep.subr.mxu0 0.0
    %60 = vmatpush1.msra.mxu0 0.0
    %61 = vmatprep.subr.mxu0 0.0
    %62 = vmatpush1.msra.mxu0 0.0
    %63 = vmatprep.subr.mxu0 0.0
    %64 = vmatpush1.msra.mxu0 0.0
    %65 = vmatprep.subr.mxu0 0.0
    %66 = vmatpush1.msra.mxu0 0.0
    %67 = vmatprep.subr.mxu0 0.0
    %68 = vmatpush1.msra.mxu0 0.0
    %69 = vmatprep.subr.mxu0 0.0
    %70 = vmatpush1.msra.mxu0 0.0
    %71 = vmatprep.subr.mxu0 0.0
    %72 = vmatpush1.msra.mxu0 0.0
    %73 = vmatprep.subr.mxu0 0.0
    %74 = vmatpush1.msra.mxu0 0.0
    %75 = vmatprep.subr.mxu0 0.0
    %76 = vmatpush1.msra.mxu0 0.0
    %77 = vmatprep.subr.mxu0 0.0
    %78 = vmatpush1.msra.mxu0 0.0
    %79 = vmatprep.subr.mxu0 0.0
    %80 = vmatpush1.msra.mxu0 0.0
    %81 = vmatprep.subr.mxu0 0.0
    %82 = vmatpush1.msra.mxu0 0.0
    %83 = vmatprep.subr.mxu0 0.0
    %84 = vmatpush1.msra.mxu0 0.0
    %85 = vmatprep.subr.mxu0 0.0
    %86 = vmatpush1.msra.mxu0 0.0
    %87 = vmatprep.subr.mxu0 0.0
    %88 = vmatpush1.msra.mxu0 0.0
    %89 = vmatprep.subr.mxu0 0.0
    %90 = vmatpush1.msra.mxu0 0.0
    %91 = vmatprep.subr.mxu0 0.0
    %92 = vmatpush1.msra.mxu0 0.0
    %93 = vmatprep.subr.mxu0 0.0
    %94 = vmatpush1.msra.mxu0 0.0
    %95 = vmatprep.mubr.f32.mxu0 0.0
    %96 = vmatmul.mubr.f32.gmra.mrb[0].mxu0 %v29
    %v97 = vpop.f32.mrb[0].mxu0
    %v98 = vadd.f32 %v25, %v97
    %v99 = vpop.f32.mrb[0].mxu0
    %100 = vdwg.mxu0
    %101 = vst [vmem:[#allocation2] sm:$0x3] %v98
    // Predicated region
    $region14: #{bert_pretraining_heads.3} parent=1 // pred_check
      _
    $region15: #{bert_pretraining_heads.3} parent=1 // pred_check_branch
      %103 = sbr.rel (0) target = $region17
    $region16: #{bert_pretraining_heads.3} parent=1 // pred_region
      %s105 = ssub.s32 32, 32
      %106 = vsyncadd [#allocation3], %s105
      %s108 = sshll.u32 [#allocation2], 4
      %s109 = int_to_ptr.vmem [resolvable:$true] %s108
      %111 = dma.vmem_to_hbm [thread:$0]  %s109, 32, %s3, [#allocation3]
    $region17: #{bert_pretraining_heads.3} parent=1 // pred_fallthru
      _
    // Predicated region
    $region18: #{bert_pretraining_heads.3} parent=1 // pred_check
      _
    $region19: #{bert_pretraining_heads.3} parent=1 // pred_check_branch
      %113 = sbr.rel (0) target = $region21
    $region20: #{bert_pretraining_heads.3} parent=1 // pred_region
      %114 = dma.done [#allocation3], 32
    $region21: #{bert_pretraining_heads.3} parent=1 // pred_fallthru
      _
    %115 = vsyncpa [#allocation3], 1

// kernel: bert_pretraining_heads.2
$region0: #{bert_pretraining_heads.2}
  #allocation0 [shape = 'u32[]', space=smem, size = 0x4, offset = 0x4, fixed_abs, tag = 'smem constant byte address 0x4 - core index']
  #allocation1 [shape = 'u32[144,128]{1,0:T(1,128)}', space=vmem, size = 0x12000, scoped, tag = 'internal scratch']
  #allocation2 [shape = 'f32[8,32]{1,0:T(8,128)}', space=vmem, size = 0x1000, scoped, tag = 'scratch operand']
  %s0 = inlined_call_operand.vmem [shape: f32[16,32], index: 0, kind: input, shape index: {}]
  %s1 = inlined_call_operand.vmem [shape: f32[32,32], index: 1, kind: input, shape index: {}]
  %s2 = inlined_call_operand.vmem [shape: f32[1,32], index: 2, kind: input, shape index: {}]
  %s3 = inlined_call_operand.vmem [shape: f32[1,32], index: 3, kind: input, shape index: {}]
  %s4 = inlined_call_operand.vmem [shape: f32[1,32], index: 4, kind: input, shape index: {}]
  %s5 = inlined_call_operand.vmem [shape: f32[32,64], index: 5, kind: input, shape index: {}]
  %s6 = inlined_call_operand.vmem [shape: f32[1,64], index: 6, kind: input, shape index: {}]
  %s7 = inlined_call_operand.hbm [shape: f32[16,64], index: 7, kind: output, shape index: {}]
  %s8 = sld [smem:[#allocation0]]
  $region65: #{bert_pretraining_heads.2} parent=0
    _
  %s10 = ssub.s32 1, %s8
  %s11 = scalar_select 0, %s10, %s8
  $region1: #{bert_pretraining_heads.2} parent=0
    #allocation3 [shape = 'u8[8192]{0}', space=vmem, size = 0x2000, scoped, tag = 'output window, operand 0']
    #allocation4 [shape = 's32[2]{0}', space=sflag, size = 0x8, scoped, tag = 'scoped memory for bert_pretraining_heads.2']
    %12 = vsyncpa [#allocation4], 0
    %s13 = scalar_lea.sflag [#allocation4], 1
    %14 = vsyncpa %s13, 0
    loop: start=0, step=1, limit=4
    $region2: #{bert_pretraining_heads.2} parent=1 // loop_pre_header
      _
    $region3: #{bert_pretraining_heads.2} parent=1 // loop_header
      %s16 = sphi 0, %s20
      %p17 = scmp.ge.s32.totalorder %s16, 4
      %s23 = sphi 0, %s35
      %s24 = sphi 0, %s31
      %s25 = sphi 0, %s23
      %s26 = sphi 0, %s24
      %s27 = sphi 0, %s25
      %s28 = sphi 0, %s26
      %s38 = sphi 0, %s40
      %s41 = sphi 0, %s38
      %s42 = sphi 0, %s41
      %s58 = sphi 0, %s42
      %s62 = sphi 0, %s62
      %s64 = sphi 0, %s62
      %s65 = sphi 0, %s64
      %s79 = sphi 0, %s65
      %s83 = sphi 0, %s83
      %s85 = sphi 0, %s83
      %s86 = sphi 0, %s85
      %s100 = sphi 0, %s86
      %s104 = sphi 0, %s104
      %s106 = sphi 0, %s104
      %s107 = sphi 0, %s106
      %s121 = sphi 0, %s107
      %s125 = sphi 0, %s125
      %s127 = sphi 0, %s125
      %s128 = sphi 0, %s127
      %s142 = sphi 0, %s128
      %s148 = sphi 0, %s150
      %s151 = sphi 0, %s148
      %s152 = sphi 0, %s151
      %s168 = sphi 0, %s152
      %s174 = sphi 0, %s176
      %s177 = sphi 0, %s174
      %s178 = sphi 0, %s177
      %s194 = sphi 0, %s178
      %s202 = sphi 0, %s204
      %s205 = sphi 0, %s202
      %s206 = sphi 0, %s205
      %s222 = sphi 0, %s206
    $region4: #{bert_pretraining_heads.2} parent=1 // loop_header_branch
      %19 = sbr.rel (%p17) target = $region8
    $region5: #{bert_pretraining_heads.2} parent=1 // loop_body
      %s21 = ssub.s32 %s16, 1
      %s22 = ssub.s32 %s16, 2
      %s29 = sadd.s32 1, %s24
      %p30 = scmp.ge.s32.totalorder %s29, 1
      %s31 = scalar_select %p30, 0, %s29
      %s32 = sadd.s32 1, %s23
      %s33 = scalar_select %p30, %s32, %s23
      %p34 = scmp.ge.s32.totalorder %s33, 2
      %s35 = scalar_select %p34, 0, %s33
      %s36 = ssub.s32 %s23, %s35
      %p37 = scmp.eq.s32.totalorder %s36, 0
      %s39 = sadd.s32 %s38, 1
      %s40 = scalar_select %p37, %s38, %s39
      %p43 = pneg %p37
      %p44 = scmp.eq.s32.totalorder %s16, 1
      %p45 = por %p43, %p44
      %p46 = scmp.ne.s32.totalorder %s38, %s41
      %p47 = scmp.eq.s32.totalorder %s16, 0
      %p48 = por %p46, %p47
      %p49 = scmp.ne.s32.totalorder %s38, %s41
      %p50 = scmp.eq.s32.totalorder %s21, 1
      %p51 = por %p49, %p50
      %p52 = scmp.ne.s32.totalorder %s41, %s42
      %p53 = scmp.eq.s32.totalorder %s21, 0
      %p54 = por %p52, %p53
      %p55 = scmp.ne.s32.totalorder %s41, %s42
      %p56 = scmp.eq.s32.totalorder %s22, 1
      %p57 = por %p55, %p56
      %p59 = scmp.ne.s32.totalorder %s42, %s58
      %p60 = scmp.eq.s32.totalorder %s22, 0
      %p61 = por %p59, %p60
      %s63 = sadd.s32 %s62, 1
      %p66 = scmp.eq.s32.totalorder %s16, 1
      %p67 = scmp.ne.s32.totalorder %s62, %s64
      %p68 = scmp.eq.s32.totalorder %s16, 0
      %p69 = por %p67, %p68
      %p70 = scmp.ne.s32.totalorder %s62, %s64
      %p71 = scmp.eq.s32.totalorder %s21, 1
      %p72 = por %p70, %p71
      %p73 = scmp.ne.s32.totalorder %s64, %s65
      %p74 = scmp.eq.s32.totalorder %s21, 0
      %p75 = por %p73, %p74
      %p76 = scmp.ne.s32.totalorder %s64, %s65
      %p77 = scmp.eq.s32.totalorder %s22, 1
      %p78 = por %p76, %p77
      %p80 = scmp.ne.s32.totalorder %s65, %s79
      %p81 = scmp.eq.s32.totalorder %s22, 0
      %p82 = por %p80, %p81
      %s84 = sadd.s32 %s83, 1
      %p87 = scmp.eq.s32.totalorder %s16, 1
      %p88 = scmp.ne.s32.totalorder %s83, %s85
      %p89 = scmp.eq.s32.totalorder %s16, 0
      %p90 = por %p88, %p89
      %p91 = scmp.ne.s32.totalorder %s83, %s85
      %p92 = scmp.eq.s32.totalorder %s21, 1
      %p93 = por %p91, %p92
      %p94 = scmp.ne.s32.totalorder %s85, %s86
      %p95 = scmp.eq.s32.totalorder %s21, 0
      %p96 = por %p94, %p95
      %p97 = scmp.ne.s32.totalorder %s85, %s86
      %p98 = scmp.eq.s32.totalorder %s22, 1
      %p99 = por %p97, %p98
      %p101 = scmp.ne.s32.totalorder %s86, %s100
      %p102 = scmp.eq.s32.totalorder %s22, 0
      %p103 = por %p101, %p102
      %s105 = sadd.s32 %s104, 1
      %p108 = scmp.eq.s32.totalorder %s16, 1
      %p109 = scmp.ne.s32.totalorder %s104, %s106
      %p110 = scmp.eq.s32.totalorder %s16, 0
      %p111 = por %p109, %p110
      %p112 = scmp.ne.s32.totalorder %s104, %s106
      %p113 = scmp.eq.s32.totalorder %s21, 1
      %p114 = por %p112, %p113
      %p115 = scmp.ne.s32.totalorder %s106, %s107
      %p116 = scmp.eq.s32.totalorder %s21, 0
      %p117 = por %p115, %p116
      %p118 = scmp.ne.s32.totalorder %s106, %s107
      %p119 = scmp.eq.s32.totalorder %s22, 1
      %p120 = por %p118, %p119
      %p122 = scmp.ne.s32.totalorder %s107, %s121
      %p123 = scmp.eq.s32.totalorder %s22, 0
      %p124 = por %p122, %p123
      %s126 = sadd.s32 %s125, 1
      %p129 = scmp.eq.s32.totalorder %s16, 1
      %p130 = scmp.ne.s32.totalorder %s125, %s127
      %p131 = scmp.eq.s32.totalorder %s16, 0
      %p132 = por %p130, %p131
      %p133 = scmp.ne.s32.totalorder %s125, %s127
      %p134 = scmp.eq.s32.totalorder %s21, 1
      %p135 = por %p133, %p134
      %p136 = scmp.ne.s32.totalorder %s127, %s128
      %p137 = scmp.eq.s32.totalorder %s21, 0
      %p138 = por %p136, %p137
      %p139 = scmp.ne.s32.totalorder %s127, %s128
      %p140 = scmp.eq.s32.totalorder %s22, 1
      %p141 = por %p139, %p140
      %p143 = scmp.ne.s32.totalorder %s128, %s142
      %p144 = scmp.eq.s32.totalorder %s22, 0
      %p145 = por %p143, %p144
      %s146 = ssub.s32 %s24, %s31
      %p147 = scmp.eq.s32.totalorder %s146, 0
      %s149 = sadd.s32 %s148, 1
      %s150 = scalar_select %p147, %s148, %s149
      %p153 = pneg %p147
      %p154 = scmp.eq.s32.totalorder %s16, 1
      %p155 = por %p153, %p154
      %p156 = scmp.ne.s32.totalorder %s148, %s151
      %p157 = scmp.eq.s32.totalorder %s16, 0
      %p158 = por %p156, %p157
      %p159 = scmp.ne.s32.totalorder %s148, %s151
      %p160 = scmp.eq.s32.totalorder %s21, 1
      %p161 = por %p159, %p160
      %p162 = scmp.ne.s32.totalorder %s151, %s152
      %p163 = scmp.eq.s32.totalorder %s21, 0
      %p164 = por %p162, %p163
      %p165 = scmp.ne.s32.totalorder %s151, %s152
      %p166 = scmp.eq.s32.totalorder %s22, 1
      %p167 = por %p165, %p166
      %p169 = scmp.ne.s32.totalorder %s152, %s168
      %p170 = scmp.eq.s32.totalorder %s22, 0
      %p171 = por %p169, %p170
      %s172 = ssub.s32 %s24, %s31
      %p173 = scmp.eq.s32.totalorder %s172, 0
      %s175 = sadd.s32 %s174, 1
      %s176 = scalar_select %p173, %s174, %s175
      %p179 = pneg %p173
      %p180 = scmp.eq.s32.totalorder %s16, 1
      %p181 = por %p179, %p180
      %p182 = scmp.ne.s32.totalorder %s174, %s177
      %p183 = scmp.eq.s32.totalorder %s16, 0
      %p184 = por %p182, %p183
      %p185 = scmp.ne.s32.totalorder %s174, %s177
      %p186 = scmp.eq.s32.totalorder %s21, 1
      %p187 = por %p185, %p186
      %p188 = scmp.ne.s32.totalorder %s177, %s178
      %p189 = scmp.eq.s32.totalorder %s21, 0
      %p190 = por %p188, %p189
      %p191 = scmp.ne.s32.totalorder %s177, %s178
      %p192 = scmp.eq.s32.totalorder %s22, 1
      %p193 = por %p191, %p192
      %p195 = scmp.ne.s32.totalorder %s178, %s194
      %p196 = scmp.eq.s32.totalorder %s22, 0
      %p197 = por %p195, %p196
      %s198 = ssub.s32 %s23, %s35
      %s199 = ssub.s32 %s24, %s31
      %s200 = sor.u32 %s198, %s199
      %p201 = scmp.eq.s32.totalorder %s200, 0
      %s203 = sadd.s32 %s202, 1
      %s204 = scalar_select %p201, %s202, %s203
      %p207 = pneg %p201
      %p208 = scmp.eq.s32.totalorder %s16, 1
      %p209 = por %p207, %p208
      %p210 = scmp.ne.s32.totalorder %s202, %s205
      %p211 = scmp.eq.s32.totalorder %s16, 0
      %p212 = por %p210, %p211
      %p213 = scmp.ne.s32.totalorder %s202, %s205
      %p214 = scmp.eq.s32.totalorder %s21, 1
      %p215 = por %p213, %p214
      %p216 = scmp.ne.s32.totalorder %s205, %s206
      %p217 = scmp.eq.s32.totalorder %s21, 0
      %p218 = por %p216, %p217
      %p219 = scmp.ne.s32.totalorder %s205, %s206
      %p220 = scmp.eq.s32.totalorder %s22, 1
      %p221 = por %p219, %p220
      %p223 = scmp.ne.s32.totalorder %s206, %s222
      %p224 = scmp.eq.s32.totalorder %s22, 0
      %p225 = por %p223, %p224
      %p226 = scmp.le.s32.totalorder 1, %s16
      %p227 = scmp.lt.s32.totalorder %s16, 3
      %p228 = pnand %p226, %p227
      %p229 = pneg %p228
      // Predicated region
      $region9: #{bert_pretraining_heads.2} parent=5 // pred_check
        _
      $region10: #{bert_pretraining_heads.2} parent=5 // pred_check_branch
        %231 = sbr.rel (%p228) target = $region12
      $region11: #{bert_pretraining_heads.2} parent=5 // pred_region
        %s232 = ssub.s32 %s16, 1
        // Predicated region
        $region13: #{bert_pretraining_heads.2} parent=11 // pred_check
          %p233 = pneg %p75
        $region14: #{bert_pretraining_heads.2} parent=11 // pred_check_branch
          %235 = sbr.rel (%p233) target = $region16
        $region15: #{bert_pretraining_heads.2} parent=11 // pred_region
          _
        $region16: #{bert_pretraining_heads.2} parent=11 // pred_fallthru
          _
        // Predicated region
        $region17: #{bert_pretraining_heads.2} parent=11 // pred_check
          %p236 = pneg %p96
        $region18: #{bert_pretraining_heads.2} parent=11 // pred_check_branch
          %238 = sbr.rel (%p236) target = $region20
        $region19: #{bert_pretraining_heads.2} parent=11 // pred_region
          _
        $region20: #{bert_pretraining_heads.2} parent=11 // pred_fallthru
          _
        // Predicated region
        $region21: #{bert_pretraining_heads.2} parent=11 // pred_check
          %p239 = pneg %p117
        $region22: #{bert_pretraining_heads.2} parent=11 // pred_check_branch
          %241 = sbr.rel (%p239) target = $region24
        $region23: #{bert_pretraining_heads.2} parent=11 // pred_region
          _
        $region24: #{bert_pretraining_heads.2} parent=11 // pred_fallthru
          _
        // Predicated region
        $region25: #{bert_pretraining_heads.2} parent=11 // pred_check
          %p242 = pneg %p138
        $region26: #{bert_pretraining_heads.2} parent=11 // pred_check_branch
          %244 = sbr.rel (%p242) target = $region28
        $region27: #{bert_pretraining_heads.2} parent=11 // pred_region
          _
        $region28: #{bert_pretraining_heads.2} parent=11 // pred_fallthru
          _
        // Predicated region
        $region29: #{bert_pretraining_heads.2} parent=11 // pred_check
          %p245 = pneg %p164
        $region30: #{bert_pretraining_heads.2} parent=11 // pred_check_branch
          %247 = sbr.rel (%p245) target = $region32
        $region31: #{bert_pretraining_heads.2} parent=11 // pred_region
          %p248 = scmp.lt.s32.totalorder %s26, 0
          %s249 = scalar_select %p248, %s26, 0
          %s250 = smul.addr %s249, 8
          %s251 = scalar_lea.vmem %s5, %s250
        $region32: #{bert_pretraining_heads.2} parent=11 // pred_fallthru
          _
        // Predicated region
        $region33: #{bert_pretraining_heads.2} parent=11 // pred_check
          %p252 = pneg %p190
        $region34: #{bert_pretraining_heads.2} parent=11 // pred_check_branch
          %254 = sbr.rel (%p252) target = $region36
        $region35: #{bert_pretraining_heads.2} parent=11 // pred_region
          %p255 = scmp.lt.s32.totalorder %s26, 0
          %s256 = scalar_select %p255, %s26, 0
          %s257 = scalar_lea.vmem %s6, %s256
        $region36: #{bert_pretraining_heads.2} parent=11 // pred_fallthru
          _
      $region12: #{bert_pretraining_heads.2} parent=5 // pred_fallthru
        _
      %p258 = scmp.lt.s32.totalorder %s16, 2
      // Predicated region
      $region37: #{bert_pretraining_heads.2} parent=5 // pred_check
        %p259 = pneg %p258
      $region38: #{bert_pretraining_heads.2} parent=5 // pred_check_branch
        %261 = sbr.rel (%p259) target = $region40
      $region39: #{bert_pretraining_heads.2} parent=5 // pred_region
        // Predicated region
        $region41: #{bert_pretraining_heads.2} parent=39 // pred_check
          %p262 = pneg %p48
        $region42: #{bert_pretraining_heads.2} parent=39 // pred_check_branch
          %264 = sbr.rel (%p262) target = $region44
        $region43: #{bert_pretraining_heads.2} parent=39 // pred_region
          %p265 = scmp.lt.s32.totalorder %s23, 1
          %s266 = scalar_select %p265, %s23, 1
          %s267 = smul.addr %s266, 8
          %s268 = scalar_lea.vmem %s0, %s267
        $region44: #{bert_pretraining_heads.2} parent=39 // pred_fallthru
          _
      $region40: #{bert_pretraining_heads.2} parent=5 // pred_fallthru
        _
      %p269 = scmp.le.s32.totalorder 1, %s16
      %p270 = scmp.lt.s32.totalorder %s16, 3
      %p271 = pnand %p269, %p270
      %p272 = pneg %p271
      // Predicated region
      $region45: #{bert_pretraining_heads.2} parent=5 // pred_check
        _
      $region46: #{bert_pretraining_heads.2} parent=5 // pred_check_branch
        %274 = sbr.rel (%p271) target = $region48
      $region47: #{bert_pretraining_heads.2} parent=5 // pred_region
        %s275 = ssub.s32 %s16, 1
        %p276 = scmp.lt.s32.totalorder %s25, 1
        %s277 = scalar_select %p276, %s25, 1
        %s278 = smul.addr %s277, 8
        %s279 = scalar_lea.vmem %s0, %s278
        %p280 = pneg %p54
        %p281 = pneg %p51
        %p282 = pneg %p75
        %p283 = pneg %p72
        %p284 = pneg %p96
        %p285 = pneg %p93
        %p286 = pneg %p117
        %p287 = pneg %p114
        %p288 = pneg %p138
        %p289 = pneg %p135
        %p290 = scmp.lt.s32.totalorder %s26, 0
        %s291 = scalar_select %p290, %s26, 0
        %s292 = smul.addr %s291, 8
        %s293 = scalar_lea.vmem %s5, %s292
        %p294 = pneg %p164
        %p295 = pneg %p161
        %p296 = scmp.lt.s32.totalorder %s26, 0
        %s297 = scalar_select %p296, %s26, 0
        %s298 = scalar_lea.vmem %s6, %s297
        %p299 = pneg %p190
        %p300 = pneg %p187
        %p301 = pneg %p218
        %p302 = pneg %p215
        %s303 = sand.u32 %s205, 1
        %s304 = scalar_lea.sflag [#allocation4], %s303
        %s305 = sand.u32 %s205, 1
        %s306 = smul.addr %s305, 8
        %s307 = scalar_lea.vmem [#allocation3], %s306
        %p308 = scmp.lt.s32.totalorder %s25, 1
        %s309 = scalar_select %p308, %s25, 1
        %s310 = smul.addr %s309, 8
        %s311 = scalar_lea.vmem %s0, %s310
        %p312 = scmp.lt.s32.totalorder %s26, 0
        %s313 = scalar_select %p312, %s26, 0
        %s314 = smul.addr %s313, 8
        %s315 = scalar_lea.vmem %s5, %s314
        %p316 = scmp.lt.s32.totalorder %s26, 0
        %s317 = scalar_select %p316, %s26, 0
        %s318 = scalar_lea.vmem %s6, %s317
        %p319 = scmp.eq.s32.totalorder %s26, 0
        // Predicated region
        $region49: #{bert_pretraining_heads.2} parent=47 // pred_check
          %p320 = pneg %p319
        $region50: #{bert_pretraining_heads.2} parent=47 // pred_check_branch
          %322 = sbr.rel (%p320) target = $region52
        $region51: #{bert_pretraining_heads.2} parent=47 // pred_region
          %v323 = vld [vmem:[%s311] sm:$0xff]
          %v324 = vld [vmem:[%s1] sm:$0xff]
          %v325 = vld [vmem:[%s1 + $0x8] sm:$0xff]
          %v326 = vld [vmem:[%s1 + $0x10] sm:$0xff]
          %v327 = vld [vmem:[%s1 + $0x18] sm:$0xff]
          %v328 = vld [vmem:[%s2] sm:$0x1]
          %v330 = vlaneseq
          %v331 = vshrl.u32 %v330, 7
          %v332 = vsub.s32 0, %v331
          %v333 = vrot.slane %v328, %v332
          %vm335 = vcmask 261120
          %v337 = vsel %vm335, %v323, 0
          %339 = vmatprep.subr.mxu0 0.0
          %340 = vmatpush1.msra.mxu0 %v324
          %341 = vmatprep.subr.mxu0 0.0
          %342 = vmatpush1.msra.mxu0 %v325
          %343 = vmatprep.subr.mxu0 0.0
          %344 = vmatpush1.msra.mxu0 %v326
          %345 = vmatprep.subr.mxu0 0.0
          %346 = vmatpush1.msra.mxu0 %v327
          %347 = vmatprep.subr.mxu0 0.0
          %348 = vmatpush1.msra.mxu0 0.0
          %349 = vmatprep.subr.mxu0 0.0
          %350 = vmatpush1.msra.mxu0 0.0
          %351 = vmatprep.subr.mxu0 0.0
          %352 = vmatpush1.msra.mxu0 0.0
          %353 = vmatprep.subr.mxu0 0.0
          %354 = vmatpush1.msra.mxu0 0.0
          %355 = vmatprep.subr.mxu0 0.0
          %356 = vmatpush1.msra.mxu0 0.0
          %357 = vmatprep.subr.mxu0 0.0
          %358 = vmatpush1.msra.mxu0 0.0
          %359 = vmatprep.subr.mxu0 0.0
          %360 = vmatpush1.msra.mxu0 0.0
          %361 = vmatprep.subr.mxu0 0.0
          %362 = vmatpush1.msra.mxu0 0.0
          %363 = vmatprep.subr.mxu0 0.0
          %364 = vmatpush1.msra.mxu0 0.0
          %365 = vmatprep.subr.mxu0 0.0
          %366 = vmatpush1.msra.mxu0 0.0
          %367 = vmatprep.subr.mxu0 0.0
          %368 = vmatpush1.msra.mxu0 0.0
          %369 = vmatprep.subr.mxu0 0.0
          %370 = vmatpush1.msra.mxu0 0.0
          %371 = vmatprep.subr.mxu0 0.0
          %372 = vmatpush1.msra.mxu0 0.0
          %373 = vmatprep.subr.mxu0 0.0
          %374 = vmatpush1.msra.mxu0 0.0
          %375 = vmatprep.subr.mxu0 0.0
          %376 = vmatpush1.msra.mxu0 0.0
          %377 = vmatprep.subr.mxu0 0.0
          %378 = vmatpush1.msra.mxu0 0.0
          %379 = vmatprep.subr.mxu0 0.0
          %380 = vmatpush1.msra.mxu0 0.0
          %381 = vmatprep.subr.mxu0 0.0
          %382 = vmatpush1.msra.mxu0 0.0
          %383 = vmatprep.subr.mxu0 0.0
          %384 = vmatpush1.msra.mxu0 0.0
          %385 = vmatprep.subr.mxu0 0.0
          %386 = vmatpush1.msra.mxu0 0.0
          %387 = vmatprep.subr.mxu0 0.0
          %388 = vmatpush1.msra.mxu0 0.0
          %389 = vmatprep.subr.mxu0 0.0
          %390 = vmatpush1.msra.mxu0 0.0
          %391 = vmatprep.subr.mxu0 0.0
          %392 = vmatpush1.msra.mxu0 0.0
          %393 = vmatprep.subr.mxu0 0.0
          %394 = vmatpush1.msra.mxu0 0.0
          %395 = vmatprep.subr.mxu0 0.0
          %396 = vmatpush1.msra.mxu0 0.0
          %397 = vmatprep.subr.mxu0 0.0
          %398 = vmatpush1.msra.mxu0 0.0
          %399 = vmatprep.subr.mxu0 0.0
          %400 = vmatpush1.msra.mxu0 0.0
          %401 = vmatprep.subr.mxu0 0.0
          %402 = vmatpush1.msra.mxu0 0.0
          %403 = vmatprep.mubr.f32.mxu0 0.0
          %404 = vmatmul.mubr.f32.gmra.mrb[0].mxu0 %v337
          %v405 = vpop.f32.mrb[0].mxu0
          %v406 = vadd.f32 %v333, %v405
          %v407 = vpop.f32.mrb[0].mxu0
          %408 = vdwg.mxu0
          %v409 = vmul.f32 %v406, 0.5
          %v410 = vmul.f32 %v406, 0.70710677
          %v411 = verf.f32.pop %v410
          %v412 = vadd.f32 %v411, 1.0
          %v413 = vmul.f32 %v409, %v412
          %v414 = vsel %vm335, %v413, 0.0
          %415 = vadd.xlane.f32.xlu0 %v414
          %v416 = vpop.xlane.xlu0 %415
          %v417 = vrcp.pop 32.0
          %v418 = vmul.f32 %v416, %v417
          %v419 = vsub.f32 %v413, %v418
          %v420 = vmul.f32 %v419, %v419
          %v421 = vsel %vm335, %v420, 0.0
          %422 = vadd.xlane.f32.xlu0 %v421
          %v423 = vpop.xlane.xlu0 %422
          %v424 = vmul.f32 %v423, %v417
          %v425 = vadd.f32 %v424, 1e-05
          %v426 = vrsqrt.pop %v425
          %v427 = vmul.f32 %v419, %v426
          %v428 = vld [vmem:[%s3] sm:$0x1]
          %v430 = vlaneseq
          %v431 = vshrl.u32 %v430, 7
          %v432 = vsub.s32 0, %v431
          %v433 = vrot.slane %v428, %v432
          %v435 = vmul.f32 %v427, %v433
          %v436 = vld [vmem:[%s4] sm:$0x1]
          %v438 = vlaneseq
          %v439 = vshrl.u32 %v438, 7
          %v440 = vsub.s32 0, %v439
          %v441 = vrot.slane %v436, %v440
          %v443 = vadd.f32 %v435, %v441
          %444 = vst.msk [vmem:[#allocation2] sm:$0xff] %vm335, %v443
        $region52: #{bert_pretraining_heads.2} parent=47 // pred_fallthru
          _
        %v445 = vld [vmem:[#allocation2] sm:$0xff]
        %v446 = vld [vmem:[%s315] sm:$0xff]
        %v447 = vld [vmem:[%s315 + $0x8] sm:$0xff]
        %v448 = vld [vmem:[%s315 + $0x10] sm:$0xff]
        %v449 = vld [vmem:[%s315 + $0x18] sm:$0xff]
        %v450 = vld [vmem:[%s318] sm:$0x1]
        %v452 = vlaneseq
        %v453 = vshrl.u32 %v452, 7
        %v454 = vsub.s32 0, %v453
        %v455 = vrot.slane %v450, %v454
        %vm457 = vcmask 261120
        %v459 = vsel %vm457, %v445, 0
        %461 = vmatprep.subr.mxu0 0.0
        %462 = vmatpush1.msra.mxu0 %v446
        %463 = vmatprep.subr.mxu0 0.0
        %464 = vmatpush1.msra.mxu0 %v447
        %465 = vmatprep.subr.mxu0 0.0
        %466 = vmatpush1.msra.mxu0 %v448
        %467 = vmatprep.subr.mxu0 0.0
        %468 = vmatpush1.msra.mxu0 %v449
        %469 = vmatprep.subr.mxu0 0.0
        %470 = vmatpush1.msra.mxu0 0.0
        %471 = vmatprep.subr.mxu0 0.0
        %472 = vmatpush1.msra.mxu0 0.0
        %473 = vmatprep.subr.mxu0 0.0
        %474 = vmatpush1.msra.mxu0 0.0
        %475 = vmatprep.subr.mxu0 0.0
        %476 = vmatpush1.msra.mxu0 0.0
        %477 = vmatprep.subr.mxu0 0.0
        %478 = vmatpush1.msra.mxu0 0.0
        %479 = vmatprep.subr.mxu0 0.0
        %480 = vmatpush1.msra.mxu0 0.0
        %481 = vmatprep.subr.mxu0 0.0
        %482 = vmatpush1.msra.mxu0 0.0
        %483 = vmatprep.subr.mxu0 0.0
        %484 = vmatpush1.msra.mxu0 0.0
        %485 = vmatprep.subr.mxu0 0.0
        %486 = vmatpush1.msra.mxu0 0.0
        %487 = vmatprep.subr.mxu0 0.0
        %488 = vmatpush1.msra.mxu0 0.0
        %489 = vmatprep.subr.mxu0 0.0
        %490 = vmatpush1.msra.mxu0 0.0
        %491 = vmatprep.subr.mxu0 0.0
        %492 = vmatpush1.msra.mxu0 0.0
        %493 = vmatprep.subr.mxu0 0.0
        %494 = vmatpush1.msra.mxu0 0.0
        %495 = vmatprep.subr.mxu0 0.0
        %496 = vmatpush1.msra.mxu0 0.0
        %497 = vmatprep.subr.mxu0 0.0
        %498 = vmatpush1.msra.mxu0 0.0
        %499 = vmatprep.subr.mxu0 0.0
        %500 = vmatpush1.msra.mxu0 0.0
        %501 = vmatprep.subr.mxu0 0.0
        %502 = vmatpush1.msra.mxu0 0.0
        %503 = vmatprep.subr.mxu0 0.0
        %504 = vmatpush1.msra.mxu0 0.0
        %505 = vmatprep.subr.mxu0 0.0
        %506 = vmatpush1.msra.mxu0 0.0
        %507 = vmatprep.subr.mxu0 0.0
        %508 = vmatpush1.msra.mxu0 0.0
        %509 = vmatprep.subr.mxu0 0.0
        %510 = vmatpush1.msra.mxu0 0.0
        %511 = vmatprep.subr.mxu0 0.0
        %512 = vmatpush1.msra.mxu0 0.0
        %513 = vmatprep.subr.mxu0 0.0
        %514 = vmatpush1.msra.mxu0 0.0
        %515 = vmatprep.subr.mxu0 0.0
        %516 = vmatpush1.msra.mxu0 0.0
        %517 = vmatprep.subr.mxu0 0.0
        %518 = vmatpush1.msra.mxu0 0.0
        %519 = vmatprep.subr.mxu0 0.0
        %520 = vmatpush1.msra.mxu0 0.0
        %521 = vmatprep.subr.mxu0 0.0
        %522 = vmatpush1.msra.mxu0 0.0
        %523 = vmatprep.subr.mxu0 0.0
        %524 = vmatpush1.msra.mxu0 0.0
        %525 = vmatprep.mubr.f32.mxu0 0.0
        %526 = vmatmul.mubr.f32.gmra.mrb[0].mxu0 %v459
        %v527 = vpop.f32.mrb[0].mxu0
        %v528 = vadd.f32 %v455, %v527
        %v529 = vpop.f32.mrb[0].mxu0
        %530 = vdwg.mxu0
        %vm531 = vcmask 523264
        %532 = vst.msk [vmem:[%s307] sm:$0xff] %vm531, %v528
        %s533 = sand.u32 %s205, 1
        %s534 = scalar_lea.sflag [#allocation4], %s533
        %s535 = sand.u32 %s205, 1
        %s536 = smul.addr %s535, 8
        %s537 = scalar_lea.vmem [#allocation3], %s536
        // Predicated region
        $region53: #{bert_pretraining_heads.2} parent=47 // pred_check
          %p538 = pneg %p215
        $region54: #{bert_pretraining_heads.2} parent=47 // pred_check_branch
          %540 = sbr.rel (%p538) target = $region56
        $region55: #{bert_pretraining_heads.2} parent=47 // pred_region
          %s542 = ssub.s32 128, 128
          %543 = vsyncadd %s534, %s542
          %s544 = sadd.s32 %s26, %s25
          %s545 = smul.addr %s544, 128
          %s546 = scalar_lea.hbm %s7, %s545
          %s548 = sshll.u32 %s537, 4
          %s549 = int_to_ptr.vmem [resolvable:$true] %s548
          %551 = dma.vmem_to_hbm [thread:$0]  %s549, 128, %s546, %s534
        $region56: #{bert_pretraining_heads.2} parent=47 // pred_fallthru
          _
      $region48: #{bert_pretraining_heads.2} parent=5 // pred_fallthru
        _
      %p552 = scmp.le.s32.totalorder 2, %s16
      // Predicated region
      $region57: #{bert_pretraining_heads.2} parent=5 // pred_check
        %p553 = pneg %p552
      $region58: #{bert_pretraining_heads.2} parent=5 // pred_check_branch
        %555 = sbr.rel (%p553) target = $region60
      $region59: #{bert_pretraining_heads.2} parent=5 // pred_region
        %s556 = ssub.s32 %s16, 2
        // Predicated region
        $region61: #{bert_pretraining_heads.2} parent=59 // pred_check
          %p557 = pneg %p221
        $region62: #{bert_pretraining_heads.2} parent=59 // pred_check_branch
          %559 = sbr.rel (%p557) target = $region64
        $region63: #{bert_pretraining_heads.2} parent=59 // pred_region
          %s560 = sand.u32 %s206, 1
          %s561 = scalar_lea.sflag [#allocation4], %s560
          %s562 = sand.u32 %s206, 1
          %s563 = smul.addr %s562, 8
          %s564 = scalar_lea.vmem [#allocation3], %s563
          %565 = dma.done %s561, 128
        $region64: #{bert_pretraining_heads.2} parent=59 // pred_fallthru
          _
      $region60: #{bert_pretraining_heads.2} parent=5 // pred_fallthru
        _
    $region6: #{bert_pretraining_heads.2} parent=1 // loop_footer
      %s20 = sadd.s32 1, %s16
    $region7: #{bert_pretraining_heads.2} parent=1 // loop_footer_branch
      %15 = sbr.rel target = $region3
    $region8: #{bert_pretraining_heads.2} parent=1 // loop_exit
      _
    %566 = vsyncpa [#allocation4], 1
    %s567 = scalar_lea.sflag [#allocation4], 1
    %568 = vsyncpa %s567, 1

</llo_original>
